<compile_context>
chip_gen: v6e
topology: v6e:2x2x1
jax: 0.10.0
libtpu: 0.0.40
codegen_flags: <defaults>
</compile_context>

<pallas_src>
import functools

import jax
import jax.numpy as jnp
from jax.experimental import pallas as pl
from jax.experimental.pallas import tpu as pltpu


def _round_up(n: int, m: int) -> int:
    return ((n + m - 1) // m) * m


def _fused_ann_kernel(*refs, num_layers: int, relu_flags: tuple):
    """Applies `num_layers` fused (matmul + bias [+ ReLU]) stages in VMEM.

    refs = (x_ref, w0t_ref, b0_ref, w1t_ref, b1_ref, ..., o_ref)
    w*t refs are already transposed to [in, out]; b* refs are [1, out].
    The hidden activation stays in registers/VMEM for the whole stack.
    """
    x_ref = refs[0]
    o_ref = refs[-1]
    h = x_ref[...]
    for l in range(num_layers):
        wt = refs[1 + 2 * l][...]        # (K_l, N_l)
        b = refs[2 + 2 * l][...]         # (1, N_l) -> broadcasts over rows
        h = jnp.dot(h.astype(wt.dtype), wt,
                    preferred_element_type=jnp.float32) + b
        if relu_flags[l]:
            h = jnp.maximum(h, 0.0)
    # True-width store (last block dim == full array dim -> legal, lane-masked
    # stores but ~8x fewer output bytes than a 128-padded writeback).
    o_ref[...] = h.astype(o_ref.dtype)


class PallasANN:
    """Mirror of the PyTorch ANN: sequentially applies its module list, fused
    into a single Pallas kernel.

    module_list entries: ("linear", w, b, fuse_relu) where w is (out, in) and
    fuse_relu marks a following nn.ReLU fused into that linear layer.
    An empty list is the identity (same as the PyTorch default).
    """

    # Below this row count we run a single gridless invocation; above it we
    # tile rows so the "parallel" grid axis has >=2 steps (v7x megacore).
    _GRIDLESS_MAX_M = 128

    def __init__(self, module_list, block_m: int = 1024):
        self._block_m = block_m
        self._params = []        # list of (w_t [K, N], b [1, N])
        self._relu_flags = []
        self._in_features = None
        self._out_features = None

        prev = None  # width feeding the next layer
        for kind, w, b, relu in module_list:
            assert kind == "linear"
            out_f, in_f = w.shape
            if prev is None:
                self._in_features = in_f
                prev = in_f
            assert in_f == prev, "layer input width mismatch"

            # Pre-transpose ONCE (eagerly, not per forward). No padding: true
            # widths are used as full array dims in the kernel.
            self._params.append((jnp.asarray(w).T, jnp.asarray(b).reshape(1, -1)))
            self._relu_flags.append(bool(relu))
            prev = out_f
            self._out_features = out_f

    def __call__(self, x):
        if not self._params:          # empty module_list == identity
            return x

        M, K = x.shape
        assert K == self._in_features
        n_out = self._out_features

        flat = []
        for wt, bp in self._params:
            flat.extend([wt, bp])

        kernel = functools.partial(
            _fused_ann_kernel,
            num_layers=len(self._params),
            relu_flags=tuple(self._relu_flags),
        )
        out_shape = jax.ShapeDtypeStruct((M, n_out), x.dtype)
        vmem_spec = pl.BlockSpec(memory_space=pltpu.MemorySpace.VMEM)

        if M <= self._GRIDLESS_MAX_M:
            # Gridless call: whole problem resident in VMEM, single invocation.
            return pl.pallas_call(
                kernel,
                out_shape=out_shape,
                in_specs=[vmem_spec] * (1 + len(flat)),
                out_specs=vmem_spec,
            )(x, *flat)

        # Large batch: tile rows; keep weights/biases as whole-array VMEM
        # residents (loaded once, no per-step double-buffering); shard the M
        # axis across TensorCores.  Choose tm so there are >=2 parallel steps
        # (v7x has 2 TCs); VMEM per step at tm=1024, K=32 is well under every
        # generation's scoped limit (v7x included).
        tm = min(self._block_m, max(8, _round_up(-(-M // 2), 8)))
        in_specs = [pl.BlockSpec((tm, K), lambda i: (i, 0))]
        in_specs += [vmem_spec] * len(flat)
        # NOTE: when M % tm != 0 the last step computes on Pallas-padded
        # garbage rows; results for those rows are discarded on writeback.
        # This relies on there being no cross-row reduction in the kernel.
        return pl.pallas_call(
            kernel,
            out_shape=out_shape,
            grid=(pl.cdiv(M, tm),),
            in_specs=in_specs,
            out_specs=pl.BlockSpec((tm, n_out), lambda i: (i, 0)),
            compiler_params=pltpu.CompilerParams(
                dimension_semantics=("parallel",)),
        )(x, *flat)


def _init_linear(key, out_features, in_features, dtype=jnp.float32):
    # Deterministic init mimicking nn.Linear default (uniform(-1/sqrt(in), 1/sqrt(in))).
    kw, kb = jax.random.split(key)
    bound = 1.0 / jnp.sqrt(jnp.asarray(in_features, dtype))
    w = jax.random.uniform(kw, (out_features, in_features), dtype, -bound, bound)
    b = jax.random.uniform(kb, (out_features,), dtype, -bound, bound)
    return w, b


if __name__ == "__main__":
    key = jax.random.PRNGKey(0)
    k_x, k_x2, k_l1, k_l2 = jax.random.split(key, 4)

    batch, in_f, hidden, out_f = 8, 32, 64, 16
    x = jax.random.normal(k_x, (batch, in_f), jnp.float32)

    w1, b1 = _init_linear(k_l1, hidden, in_f)
    w2, b2 = _init_linear(k_l2, out_f, hidden)

    # module_list equivalent to: [nn.Linear(32,64), nn.ReLU(), nn.Linear(64,16)]
    ann = PallasANN([
        ("linear", w1, b1, True),    # Linear + fused ReLU
        ("linear", w2, b2, False),   # Linear
    ])

    def ref_fn(inp):
        return jnp.maximum(inp @ w1.T + b1, 0.0) @ w2.T + b2

    # Small batch -> gridless path.
    y = ann(x)
    jax.block_until_ready(y)
    assert y.shape == (batch, out_f)
    assert jnp.allclose(y, ref_fn(x), atol=1e-5, rtol=1e-5)

    # Larger, non-multiple-of-tile batch -> gridded (>=2 parallel steps) path.
    x_big = jax.random.normal(k_x2, (1000, in_f), jnp.float32)
    y_big = ann(x_big)
    jax.block_until_ready(y_big)
    assert y_big.shape == (1000, out_f)
    assert jnp.allclose(y_big, ref_fn(x_big), atol=1e-5, rtol=1e-5)

    # Empty module_list == identity (PyTorch default).
    ident = PallasANN([])
    assert jnp.array_equal(ident(x), x)

    print("KERNEL_OK")
</pallas_src>

<mosaic_0001>
module attributes {stable_mosaic.version = 11 : i64} {
  func.func @_fused_ann_kernel(%arg0: memref<8x32xf32, #tpu.memory_space<vmem>>, %arg1: memref<32x64xf32, #tpu.memory_space<vmem>>, %arg2: memref<1x64xf32, #tpu.memory_space<vmem>>, %arg3: memref<64x16xf32, #tpu.memory_space<vmem>>, %arg4: memref<1x16xf32, #tpu.memory_space<vmem>>, %arg5: memref<8x16xf32, #tpu.memory_space<vmem>>) attributes {dimension_semantics = [], scalar_prefetch = 0 : i64, scratch_operands = 0 : i64, tpu.core_type = #tpu.core_type<tc>} {
    %c0 = arith.constant 0 : index
    %c0_0 = arith.constant 0 : index
    %0 = vector.load %arg0[%c0, %c0_0] : memref<8x32xf32, #tpu.memory_space<vmem>>, vector<8x32xf32>
    %c0_1 = arith.constant 0 : index
    %c0_2 = arith.constant 0 : index
    %1 = vector.load %arg1[%c0_1, %c0_2] : memref<32x64xf32, #tpu.memory_space<vmem>>, vector<32x64xf32>
    %c0_3 = arith.constant 0 : index
    %c0_4 = arith.constant 0 : index
    %2 = vector.load %arg2[%c0_3, %c0_4] : memref<1x64xf32, #tpu.memory_space<vmem>>, vector<1x64xf32>
    %cst = arith.constant dense<0.000000e+00> : vector<8x64xf32>
    %3 = tpu.matmul %0, %1, %cst {dimension_numbers = #tpu.dot_dimension_numbers<[1], [0], [0], [1], [0, 0, 1, 1], [], []>} : vector<8x32xf32>, vector<32x64xf32>, vector<8x64xf32> -> vector<8x64xf32>
    %4 = vector.broadcast %2 : vector<1x64xf32> to vector<8x64xf32>
    %5 = arith.addf %3, %4 : vector<8x64xf32>
    %cst_5 = arith.constant 0.000000e+00 : f32
    %6 = vector.broadcast %cst_5 : f32 to vector<8x64xf32>
    %7 = arith.maximumf %5, %6 : vector<8x64xf32>
    %c0_6 = arith.constant 0 : index
    %c0_7 = arith.constant 0 : index
    %8 = vector.load %arg3[%c0_6, %c0_7] : memref<64x16xf32, #tpu.memory_space<vmem>>, vector<64x16xf32>
    %c0_8 = arith.constant 0 : index
    %c0_9 = arith.constant 0 : index
    %9 = vector.load %arg4[%c0_8, %c0_9] : memref<1x16xf32, #tpu.memory_space<vmem>>, vector<1x16xf32>
    %cst_10 = arith.constant dense<0.000000e+00> : vector<8x16xf32>
    %10 = tpu.matmul %7, %8, %cst_10 {dimension_numbers = #tpu.dot_dimension_numbers<[1], [0], [0], [1], [0, 0, 1, 1], [], []>} : vector<8x64xf32>, vector<64x16xf32>, vector<8x16xf32> -> vector<8x16xf32>
    %11 = vector.broadcast %9 : vector<1x16xf32> to vector<8x16xf32>
    %12 = arith.addf %10, %11 : vector<8x16xf32>
    %c0_11 = arith.constant 0 : index
    %c0_12 = arith.constant 0 : index
    %13 = vector.load %arg5[%c0_11, %c0_12] : memref<8x16xf32, #tpu.memory_space<vmem>>, vector<8x16xf32>
    tpu.vector_store %arg5[%c0_11, %c0_12], %12 {strides = array<i32>} : memref<8x16xf32, #tpu.memory_space<vmem>>, vector<8x16xf32>,
    return
  }
}

</mosaic_0001>

<llo_original>
// kernel: tpu_custom_call.1
$region0: #{tpu_custom_call.1}
  #allocation0 [shape = 'u32[]', space=smem, size = 0x4, offset = 0x4, fixed_abs, tag = 'smem constant byte address 0x4 - core index']
  #allocation1 [shape = 'u32[144,128]{1,0:T(1,128)}', space=vmem, size = 0x12000, scoped, tag = 'internal scratch']
  %s0 = inlined_call_operand.vmem [shape: f32[8,32], index: 0, kind: input, shape index: {}]
  %s1 = inlined_call_operand.vmem [shape: f32[32,64], index: 1, kind: input, shape index: {}]
  %s2 = inlined_call_operand.vmem [shape: f32[1,64], index: 2, kind: input, shape index: {}]
  %s3 = inlined_call_operand.vmem [shape: f32[64,16], index: 3, kind: input, shape index: {}]
  %s4 = inlined_call_operand.vmem [shape: f32[1,16], index: 4, kind: input, shape index: {}]
  %s5 = inlined_call_operand.hbm [shape: f32[8,16], index: 5, kind: output, shape index: {}]
  %s6 = sld [smem:[#allocation0]]
  $region30: #{tpu_custom_call.1} parent=0
    _
  %s8 = ssub.s32 1, %s6
  %s9 = scalar_select 0, %s8, %s6
  $region1: #{tpu_custom_call.1} parent=0
    #allocation2 [shape = 'u8[4096]{0}', space=vmem, size = 0x1000, scoped, tag = 'output window, operand 0, single buffered']
    #allocation3 [shape = 's32[1]{0}', space=sflag, size = 0x4, scoped, tag = 'scoped memory for tpu_custom_call.1']
    %10 = vsyncpa [#allocation3], 0
    // Predicated region
    $region2: #{tpu_custom_call.1} parent=1 // pred_check
      _
    $region3: #{tpu_custom_call.1} parent=1 // pred_check_branch
      %12 = sbr.rel (0) target = $region5
    $region4: #{tpu_custom_call.1} parent=1 // pred_region
      _
    $region5: #{tpu_custom_call.1} parent=1 // pred_fallthru
      _
    // Predicated region
    $region6: #{tpu_custom_call.1} parent=1 // pred_check
      _
    $region7: #{tpu_custom_call.1} parent=1 // pred_check_branch
      %14 = sbr.rel (0) target = $region9
    $region8: #{tpu_custom_call.1} parent=1 // pred_region
      _
    $region9: #{tpu_custom_call.1} parent=1 // pred_fallthru
      _
    // Predicated region
    $region10: #{tpu_custom_call.1} parent=1 // pred_check
      _
    $region11: #{tpu_custom_call.1} parent=1 // pred_check_branch
      %16 = sbr.rel (0) target = $region13
    $region12: #{tpu_custom_call.1} parent=1 // pred_region
      _
    $region13: #{tpu_custom_call.1} parent=1 // pred_fallthru
      _
    // Predicated region
    $region14: #{tpu_custom_call.1} parent=1 // pred_check
      _
    $region15: #{tpu_custom_call.1} parent=1 // pred_check_branch
      %18 = sbr.rel (0) target = $region17
    $region16: #{tpu_custom_call.1} parent=1 // pred_region
      _
    $region17: #{tpu_custom_call.1} parent=1 // pred_fallthru
      _
    // Predicated region
    $region18: #{tpu_custom_call.1} parent=1 // pred_check
      _
    $region19: #{tpu_custom_call.1} parent=1 // pred_check_branch
      %20 = sbr.rel (0) target = $region21
    $region20: #{tpu_custom_call.1} parent=1 // pred_region
      _
    $region21: #{tpu_custom_call.1} parent=1 // pred_fallthru
      _
    %v21 = vld [vmem:[%s0] sm:$0xff]
    %v22 = vld [vmem:[%s1] sm:$0xff]
    %v23 = vld [vmem:[%s1 + $0x8] sm:$0xff]
    %v24 = vld [vmem:[%s1 + $0x10] sm:$0xff]
    %v25 = vld [vmem:[%s1 + $0x18] sm:$0xff]
    %v26 = vld [vmem:[%s2] sm:$0x1]
    %v28 = vlaneseq
    %v29 = vshrl.u32 %v28, 7
    %v30 = vsub.s32 0, %v29
    %v31 = vrot.slane %v26, %v30
    %vm33 = vcmask 261120
    %v35 = vsel %vm33, %v21, 0
    %37 = vmatprep.subr.mxu0 0.0
    %38 = vmatpush1.msra.mxu0 0.0
    %39 = vmatprep.subr.mxu0 0.0
    %40 = vmatpush1.msra.mxu0 0.0
    %41 = vmatprep.subr.mxu0 0.0
    %42 = vmatpush1.msra.mxu0 0.0
    %43 = vmatprep.subr.mxu0 0.0
    %44 = vmatpush1.msra.mxu0 0.0
    %45 = vmatprep.subr.mxu0 0.0
    %46 = vmatpush1.msra.mxu0 0.0
    %47 = vmatprep.subr.mxu0 0.0
    %48 = vmatpush1.msra.mxu0 0.0
    %49 = vmatprep.subr.mxu0 0.0
    %50 = vmatpush1.msra.mxu0 0.0
    %51 = vmatprep.subr.mxu0 0.0
    %52 = vmatpush1.msra.mxu0 0.0
    %53 = vmatprep.subr.mxu0 0.0
    %54 = vmatpush1.msra.mxu0 0.0
    %55 = vmatprep.subr.mxu0 0.0
    %56 = vmatpush1.msra.mxu0 0.0
    %57 = vmatprep.subr.mxu0 0.0
    %58 = vmatpush1.msra.mxu0 0.0
    %59 = vmatprep.subr.mxu0 0.0
    %60 = vmatpush1.msra.mxu0 0.0
    %61 = vmatprep.subr.mxu0 0.0
    %62 = vmatpush1.msra.mxu0 %v25
    %63 = vmatprep.subr.mxu0 0.0
    %64 = vmatpush1.msra.mxu0 %v24
    %65 = vmatprep.subr.mxu0 0.0
    %66 = vmatpush1.msra.mxu0 %v23
    %67 = vmatprep.subr.mxu0 0.0
    %68 = vmatpush1.msra.mxu0 %v22
    %69 = vmatprep.subr.mxu0 0.0
    %70 = vmatpush2.msra.mxu0 0.0
    %71 = vmatprep.subr.mxu0 0.0
    %72 = vmatpush2.msra.mxu0 0.0
    %73 = vmatprep.subr.mxu0 0.0
    %74 = vmatpush2.msra.mxu0 0.0
    %75 = vmatprep.subr.mxu0 0.0
    %76 = vmatpush2.msra.mxu0 0.0
    %77 = vmatprep.subr.mxu0 0.0
    %78 = vmatpush2.msra.mxu0 0.0
    %79 = vmatprep.subr.mxu0 0.0
    %80 = vmatpush2.msra.mxu0 0.0
    %81 = vmatprep.subr.mxu0 0.0
    %82 = vmatpush2.msra.mxu0 0.0
    %83 = vmatprep.subr.mxu0 0.0
    %84 = vmatpush2.msra.mxu0 0.0
    %85 = vmatprep.subr.mxu0 0.0
    %86 = vmatpush2.msra.mxu0 0.0
    %87 = vmatprep.subr.mxu0 0.0
    %88 = vmatpush2.msra.mxu0 0.0
    %89 = vmatprep.subr.mxu0 0.0
    %90 = vmatpush2.msra.mxu0 0.0
    %91 = vmatprep.subr.mxu0 0.0
    %92 = vmatpush2.msra.mxu0 0.0
    %93 = vmatprep.subr.mxu0 0.0
    %94 = vmatpush2.msra.mxu0 0.0
    %95 = vmatprep.subr.mxu0 0.0
    %96 = vmatpush2.msra.mxu0 0.0
    %97 = vmatprep.subr.mxu0 0.0
    %98 = vmatpush2.msra.mxu0 0.0
    %99 = vmatprep.subr.mxu0 0.0
    %100 = vmatpush2.msra.mxu0 0.0
    %101 = vmatprep.mubr.f32.mxu0 0.0
    %102 = vmatmul.mubr.f32.gmra.mxu0 %v35
    %v103 = vpop.f32.mrf.mxu0
    %v104 = vadd.f32 %v31, %v103
    %v105 = vpop.f32.mrf.mxu0
    %106 = vdwg.mxu0
    %v107 = vmax.f32 %v104, 0.0
    %v108 = vld [vmem:[%s3] sm:$0xff]
    %v109 = vld [vmem:[%s3 + $0x8] sm:$0xff]
    %v110 = vld [vmem:[%s3 + $0x10] sm:$0xff]
    %v111 = vld [vmem:[%s3 + $0x18] sm:$0xff]
    %v112 = vld [vmem:[%s3 + $0x20] sm:$0xff]
    %v113 = vld [vmem:[%s3 + $0x28] sm:$0xff]
    %v114 = vld [vmem:[%s3 + $0x30] sm:$0xff]
    %v115 = vld [vmem:[%s3 + $0x38] sm:$0xff]
    %v116 = vld [vmem:[%s4] sm:$0x1]
    %v118 = vlaneseq
    %v119 = vshrl.u32 %v118, 7
    %v120 = vsub.s32 0, %v119
    %v121 = vrot.slane %v116, %v120
    %vm123 = vcmask 523264
    %v125 = vsel %vm123, %v107, 0
    %127 = vmatprep.subr.mxu0 0.0
    %128 = vmatpush1.msra.mxu0 0.0
    %129 = vmatprep.subr.mxu0 0.0
    %130 = vmatpush1.msra.mxu0 0.0
    %131 = vmatprep.subr.mxu0 0.0
    %132 = vmatpush1.msra.mxu0 0.0
    %133 = vmatprep.subr.mxu0 0.0
    %134 = vmatpush1.msra.mxu0 0.0
    %135 = vmatprep.subr.mxu0 0.0
    %136 = vmatpush1.msra.mxu0 0.0
    %137 = vmatprep.subr.mxu0 0.0
    %138 = vmatpush1.msra.mxu0 0.0
    %139 = vmatprep.subr.mxu0 0.0
    %140 = vmatpush1.msra.mxu0 0.0
    %141 = vmatprep.subr.mxu0 0.0
    %142 = vmatpush1.msra.mxu0 0.0
    %143 = vmatprep.subr.mxu0 0.0
    %144 = vmatpush1.msra.mxu0 %v115
    %145 = vmatprep.subr.mxu0 0.0
    %146 = vmatpush1.msra.mxu0 %v114
    %147 = vmatprep.subr.mxu0 0.0
    %148 = vmatpush1.msra.mxu0 %v113
    %149 = vmatprep.subr.mxu0 0.0
    %150 = vmatpush1.msra.mxu0 %v112
    %151 = vmatprep.subr.mxu0 0.0
    %152 = vmatpush1.msra.mxu0 %v111
    %153 = vmatprep.subr.mxu0 0.0
    %154 = vmatpush1.msra.mxu0 %v110
    %155 = vmatprep.subr.mxu0 0.0
    %156 = vmatpush1.msra.mxu0 %v109
    %157 = vmatprep.subr.mxu0 0.0
    %158 = vmatpush1.msra.mxu0 %v108
    %159 = vmatprep.subr.mxu0 0.0
    %160 = vmatpush2.msra.mxu0 0.0
    %161 = vmatprep.subr.mxu0 0.0
    %162 = vmatpush2.msra.mxu0 0.0
    %163 = vmatprep.subr.mxu0 0.0
    %164 = vmatpush2.msra.mxu0 0.0
    %165 = vmatprep.subr.mxu0 0.0
    %166 = vmatpush2.msra.mxu0 0.0
    %167 = vmatprep.subr.mxu0 0.0
    %168 = vmatpush2.msra.mxu0 0.0
    %169 = vmatprep.subr.mxu0 0.0
    %170 = vmatpush2.msra.mxu0 0.0
    %171 = vmatprep.subr.mxu0 0.0
    %172 = vmatpush2.msra.mxu0 0.0
    %173 = vmatprep.subr.mxu0 0.0
    %174 = vmatpush2.msra.mxu0 0.0
    %175 = vmatprep.subr.mxu0 0.0
    %176 = vmatpush2.msra.mxu0 0.0
    %177 = vmatprep.subr.mxu0 0.0
    %178 = vmatpush2.msra.mxu0 0.0
    %179 = vmatprep.subr.mxu0 0.0
    %180 = vmatpush2.msra.mxu0 0.0
    %181 = vmatprep.subr.mxu0 0.0
    %182 = vmatpush2.msra.mxu0 0.0
    %183 = vmatprep.subr.mxu0 0.0
    %184 = vmatpush2.msra.mxu0 0.0
    %185 = vmatprep.subr.mxu0 0.0
    %186 = vmatpush2.msra.mxu0 0.0
    %187 = vmatprep.subr.mxu0 0.0
    %188 = vmatpush2.msra.mxu0 0.0
    %189 = vmatprep.subr.mxu0 0.0
    %190 = vmatpush2.msra.mxu0 0.0
    %191 = vmatprep.mubr.f32.mxu0 0.0
    %192 = vmatmul.mubr.f32.gmra.mxu0 %v125
    %v193 = vpop.f32.mrf.mxu0
    %v194 = vadd.f32 %v121, %v193
    %v195 = vpop.f32.mrf.mxu0
    %196 = vdwg.mxu0
    %vm197 = vcmask 130048
    %198 = vst.msk [vmem:[#allocation2] sm:$0xff] %vm197, %v194
    // Predicated region
    $region22: #{tpu_custom_call.1} parent=1 // pred_check
      _
    $region23: #{tpu_custom_call.1} parent=1 // pred_check_branch
      %200 = sbr.rel (0) target = $region25
    $region24: #{tpu_custom_call.1} parent=1 // pred_region
      %s202 = ssub.s32 128, 128
      %203 = vsyncadd [#allocation3], %s202
      %s205 = sshll.u32 [#allocation2], 4
      %s206 = int_to_ptr.vmem [resolvable:$true] %s205
      %208 = dma.vmem_to_hbm [thread:$0]  %s206, 128, %s5, [#allocation3]
    $region25: #{tpu_custom_call.1} parent=1 // pred_fallthru
      _
    // Predicated region
    $region26: #{tpu_custom_call.1} parent=1 // pred_check
      _
    $region27: #{tpu_custom_call.1} parent=1 // pred_check_branch
      %210 = sbr.rel (0) target = $region29
    $region28: #{tpu_custom_call.1} parent=1 // pred_region
      %211 = dma.done [#allocation3], 128
    $region29: #{tpu_custom_call.1} parent=1 // pred_fallthru
      _
    %212 = vsyncpa [#allocation3], 1

</llo_original>
